<compile_context>
chip_gen: v5e
topology: v5e:2x2
jax: 0.10.0
libtpu: 0.0.40
codegen_flags: <defaults>
</compile_context>

<pallas_src>
import functools

import jax
import jax.numpy as jnp
from jax.experimental import pallas as pl
from jax.experimental.pallas import tpu as pltpu


def _round_up(n, m):
    return ((n + m - 1) // m) * m


def pima_kernel(x_ref, w1_ref, b1_ref, w2_ref, b2_ref, w3_ref, b3_ref, o_ref):
    # x: (tbr, 128) f32 — each 128-lane row packs 16 batch rows x 8 features.
    x = x_ref[...]
    # hidden1 + ReLU : (tbr,128) @ (128,192) -> (tbr,192)   [block-diag kron(W1)]
    h1 = jnp.dot(x, w1_ref[...], preferred_element_type=jnp.float32) + b1_ref[...]
    h1 = jnp.maximum(h1, 0.0)
    # hidden2 + ReLU : (tbr,192) @ (192,128) -> (tbr,128)
    h2 = jnp.dot(h1, w2_ref[...], preferred_element_type=jnp.float32) + b2_ref[...]
    h2 = jnp.maximum(h2, 0.0)
    # output logits : (tbr,128) @ (128,16) -> (tbr,16)  (one column per batch slot)
    z = jnp.dot(h2, w3_ref[...], preferred_element_type=jnp.float32) + b3_ref[...]
    # numerically stable sigmoid (exp argument is always <= 0)
    e = jnp.exp(-jnp.abs(z))
    p = 1.0 / (1.0 + e)
    o_ref[...] = jnp.where(z >= 0.0, p, 1.0 - p).astype(o_ref.dtype)


@functools.partial(jax.jit, static_argnames=("block_b",))
def pima_forward(x, params, *, block_b=65536):
    """x: (B, 8) float32 -> (B, 1) float32 (same semantics as the torch module)."""
    w1, b1, w2, b2, w3, b3 = params
    B = x.shape[0]

    # Pad only to the 128-lane granularity (not to a multiple of the tile).
    B_pad = _round_up(B, 128)
    if B_pad != B:
        x = jnp.pad(x, ((0, B_pad - B), (0, 0)))

    # Free, layout-preserving reshape: 16 batch rows per 128-lane row.
    R = B_pad // 16
    xr = x.reshape(R, 128)

    # Batch tile: capped by block_b, multiple of 128, and split into >=2 grid
    # steps when the batch is large enough (so both v7x TensorCores pull HBM).
    cap = _round_up(max(block_b, 128), 128)
    tb = min(cap, max(128, _round_up(pl.cdiv(B_pad, 2), 128)))
    tbr = tb // 16                      # rows of the reshaped array per block
    grid_n = pl.cdiv(R, tbr)            # last block may be ragged

    # Block-diagonal expanded weights: kron(I16, W.T) maps the packed
    # (slot, feature) lane layout through an ordinary lane-dense matmul.
    eye16 = jnp.eye(16, dtype=jnp.float32)
    w1e = jnp.kron(eye16, w1.T)                       # (128, 192)
    w2e = jnp.kron(eye16, w2.T)                       # (192, 128)
    w3e = jnp.kron(eye16, w3.T)                       # (128, 16)
    b1e = jnp.tile(b1.reshape(-1), 16).reshape(1, 192)
    b2e = jnp.tile(b2.reshape(-1), 16).reshape(1, 128)
    b3e = jnp.tile(b3.reshape(-1), 16).reshape(1, 16)

    full = lambda i: (0, 0)  # weights/biases stay VMEM-resident across grid steps
    out_r = pl.pallas_call(
        pima_kernel,
        out_shape=jax.ShapeDtypeStruct((R, 16), jnp.float32),
        grid=(grid_n,),
        in_specs=[
            pl.BlockSpec((tbr, 128), lambda i: (i, 0)),   # packed x tile
            pl.BlockSpec((128, 192), full),               # kron(W1)
            pl.BlockSpec((1, 192), full),                 # tiled b1
            pl.BlockSpec((192, 128), full),               # kron(W2)
            pl.BlockSpec((1, 128), full),                 # tiled b2
            pl.BlockSpec((128, 16), full),                # kron(W3)
            pl.BlockSpec((1, 16), full),                  # tiled b3
        ],
        out_specs=pl.BlockSpec((tbr, 16), lambda i: (i, 0)),
        compiler_params=pltpu.CompilerParams(
            dimension_semantics=("parallel",),
            vmem_limit_bytes=48 * 1024 * 1024,
        ),
    )(xr, w1e, b1e, w2e, b2e, w3e, b3e)

    # Row-major (R, 16) -> (B_pad, 1) is a free reshape; then drop padded rows.
    return out_r.reshape(B_pad, 1)[:B]


def init_params(key):
    """Deterministic init mimicking torch.nn.Linear (uniform +/- 1/sqrt(fan_in)).

    Weights in PyTorch layout (out_features, in_features); biases (out, 1)."""
    def linear(key, fan_in, fan_out):
        kw, kb = jax.random.split(key)
        bound = 1.0 / jnp.sqrt(fan_in)
        w = jax.random.uniform(kw, (fan_out, fan_in), jnp.float32, -bound, bound)
        b = jax.random.uniform(kb, (fan_out, 1), jnp.float32, -bound, bound)
        return w, b

    k1, k2, k3 = jax.random.split(key, 3)
    w1, b1 = linear(k1, 8, 12)
    w2, b2 = linear(k2, 12, 8)
    w3, b3 = linear(k3, 8, 1)
    return (w1, b1, w2, b2, w3, b3)


def pima_forward_ref(x, params):
    """Pure-JAX reference for correctness checking."""
    w1, b1, w2, b2, w3, b3 = params
    h1 = jnp.maximum(x @ w1.T + b1.reshape(1, -1), 0.0)
    h2 = jnp.maximum(h1 @ w2.T + b2.reshape(1, -1), 0.0)
    return jax.nn.sigmoid(h2 @ w3.T + b3.reshape(1, -1))


if __name__ == "__main__":
    key = jax.random.PRNGKey(0)
    kx, kp = jax.random.split(key)
    params = init_params(kp)

    # 1) Aligned batch, multi-step grid (block_b=256 -> 3 grid steps).
    B1 = 768
    x1 = jax.random.normal(kx, (B1, 8), dtype=jnp.float32)
    out1 = jax.block_until_ready(pima_forward(x1, params, block_b=256))
    ref1 = pima_forward_ref(x1, params)
    assert out1.shape == (B1, 1), out1.shape
    assert jnp.allclose(out1, ref1, atol=1e-5, rtol=1e-5), "mismatch vs reference (B=768)"

    # 2) Batch that pads to 640 and leaves a ragged last block (default tile).
    B2 = 600
    x2 = jax.random.normal(jax.random.PRNGKey(1), (B2, 8), dtype=jnp.float32)
    out2 = jax.block_until_ready(pima_forward(x2, params))
    ref2 = pima_forward_ref(x2, params)
    assert out2.shape == (B2, 1), out2.shape
    assert jnp.allclose(out2, ref2, atol=1e-5, rtol=1e-5), "mismatch vs reference (B=600)"

    # 3) Tiny unaligned batch exercising the padding + single-tile path.
    B3 = 37
    x3 = jax.random.normal(jax.random.PRNGKey(2), (B3, 8), dtype=jnp.float32)
    out3 = jax.block_until_ready(pima_forward(x3, params))
    ref3 = pima_forward_ref(x3, params)
    assert out3.shape == (B3, 1), out3.shape
    assert jnp.allclose(out3, ref3, atol=1e-5, rtol=1e-5), "mismatch vs reference (B=37)"

    print("KERNEL_OK")
</pallas_src>

<mosaic_0001>
module attributes {stable_mosaic.version = 11 : i64} {
  func.func @pima_kernel(%arg0: i32, %arg1: memref<16x128xf32, #tpu.memory_space<vmem>>, %arg2: memref<128x192xf32, #tpu.memory_space<vmem>>, %arg3: memref<1x192xf32, #tpu.memory_space<vmem>>, %arg4: memref<192x128xf32, #tpu.memory_space<vmem>>, %arg5: memref<1x128xf32, #tpu.memory_space<vmem>>, %arg6: memref<128x16xf32, #tpu.memory_space<vmem>>, %arg7: memref<1x16xf32, #tpu.memory_space<vmem>>, %arg8: memref<16x16xf32, #tpu.memory_space<vmem>>) attributes {dimension_semantics = [#tpu.dimension_semantics<parallel>], iteration_bounds = array<i64: 3>, scalar_prefetch = 0 : i64, scratch_operands = 0 : i64, tpu.core_type = #tpu.core_type<tc>, window_params = [{transform_indices = @transform_0, window_bounds = array<i64: 16, 128>}, {pipeline_mode = #tpu.pipeline_mode<synchronous>, transform_indices = @transform_1, window_bounds = array<i64: 128, 192>}, {pipeline_mode = #tpu.pipeline_mode<synchronous>, transform_indices = @transform_2, window_bounds = array<i64: 1, 192>}, {pipeline_mode = #tpu.pipeline_mode<synchronous>, transform_indices = @transform_3, window_bounds = array<i64: 192, 128>}, {pipeline_mode = #tpu.pipeline_mode<synchronous>, transform_indices = @transform_4, window_bounds = array<i64: 1, 128>}, {pipeline_mode = #tpu.pipeline_mode<synchronous>, transform_indices = @transform_5, window_bounds = array<i64: 128, 16>}, {pipeline_mode = #tpu.pipeline_mode<synchronous>, transform_indices = @transform_6, window_bounds = array<i64: 1, 16>}, {transform_indices = @transform_7, window_bounds = array<i64: 16, 16>}]} {
    %c0 = arith.constant 0 : index
    %c0_0 = arith.constant 0 : index
    %0 = vector.load %arg1[%c0, %c0_0] : memref<16x128xf32, #tpu.memory_space<vmem>>, vector<16x128xf32>
    %c0_1 = arith.constant 0 : index
    %c0_2 = arith.constant 0 : index
    %1 = vector.load %arg2[%c0_1, %c0_2] : memref<128x192xf32, #tpu.memory_space<vmem>>, vector<128x192xf32>
    %cst = arith.constant dense<0.000000e+00> : vector<16x192xf32>
    %2 = tpu.matmul %0, %1, %cst {dimension_numbers = #tpu.dot_dimension_numbers<[1], [0], [0], [1], [0, 0, 1, 1], [], []>} : vector<16x128xf32>, vector<128x192xf32>, vector<16x192xf32> -> vector<16x192xf32>
    %c0_3 = arith.constant 0 : index
    %c0_4 = arith.constant 0 : index
    %3 = vector.load %arg3[%c0_3, %c0_4] : memref<1x192xf32, #tpu.memory_space<vmem>>, vector<1x192xf32>
    %4 = vector.broadcast %3 : vector<1x192xf32> to vector<16x192xf32>
    %5 = arith.addf %2, %4 : vector<16x192xf32>
    %cst_5 = arith.constant 0.000000e+00 : f32
    %6 = vector.broadcast %cst_5 : f32 to vector<16x192xf32>
    %7 = arith.maximumf %5, %6 : vector<16x192xf32>
    %c0_6 = arith.constant 0 : index
    %c0_7 = arith.constant 0 : index
    %8 = vector.load %arg4[%c0_6, %c0_7] : memref<192x128xf32, #tpu.memory_space<vmem>>, vector<192x128xf32>
    %cst_8 = arith.constant dense<0.000000e+00> : vector<16x128xf32>
    %9 = tpu.matmul %7, %8, %cst_8 {dimension_numbers = #tpu.dot_dimension_numbers<[1], [0], [0], [1], [0, 0, 1, 1], [], []>} : vector<16x192xf32>, vector<192x128xf32>, vector<16x128xf32> -> vector<16x128xf32>
    %c0_9 = arith.constant 0 : index
    %c0_10 = arith.constant 0 : index
    %10 = vector.load %arg5[%c0_9, %c0_10] : memref<1x128xf32, #tpu.memory_space<vmem>>, vector<1x128xf32>
    %11 = vector.broadcast %10 : vector<1x128xf32> to vector<16x128xf32>
    %12 = arith.addf %9, %11 : vector<16x128xf32>
    %cst_11 = arith.constant 0.000000e+00 : f32
    %13 = vector.broadcast %cst_11 : f32 to vector<16x128xf32>
    %14 = arith.maximumf %12, %13 : vector<16x128xf32>
    %c0_12 = arith.constant 0 : index
    %c0_13 = arith.constant 0 : index
    %15 = vector.load %arg6[%c0_12, %c0_13] : memref<128x16xf32, #tpu.memory_space<vmem>>, vector<128x16xf32>
    %cst_14 = arith.constant dense<0.000000e+00> : vector<16x16xf32>
    %16 = tpu.matmul %14, %15, %cst_14 {dimension_numbers = #tpu.dot_dimension_numbers<[1], [0], [0], [1], [0, 0, 1, 1], [], []>} : vector<16x128xf32>, vector<128x16xf32>, vector<16x16xf32> -> vector<16x16xf32>
    %c0_15 = arith.constant 0 : index
    %c0_16 = arith.constant 0 : index
    %17 = vector.load %arg7[%c0_15, %c0_16] : memref<1x16xf32, #tpu.memory_space<vmem>>, vector<1x16xf32>
    %18 = vector.broadcast %17 : vector<1x16xf32> to vector<16x16xf32>
    %19 = arith.addf %16, %18 : vector<16x16xf32>
    %20 = math.absf %19 : vector<16x16xf32>
    %cst_17 = arith.constant 0.000000e+00 : f32
    %21 = vector.broadcast %cst_17 : f32 to vector<16x16xf32>
    %22 = arith.subf %21, %20 : vector<16x16xf32>
    %23 = math.exp %22 : vector<16x16xf32>
    %cst_18 = arith.constant 1.000000e+00 : f32
    %24 = vector.broadcast %cst_18 : f32 to vector<16x16xf32>
    %25 = arith.addf %24, %23 : vector<16x16xf32>
    %cst_19 = arith.constant 1.000000e+00 : f32
    %26 = vector.broadcast %cst_19 : f32 to vector<16x16xf32>
    %27 = arith.divf %26, %25 : vector<16x16xf32>
    %cst_20 = arith.constant 0.000000e+00 : f32
    %28 = vector.broadcast %cst_20 : f32 to vector<16x16xf32>
    %29 = arith.cmpf oge, %19, %28 : vector<16x16xf32>
    %cst_21 = arith.constant 1.000000e+00 : f32
    %30 = vector.broadcast %cst_21 : f32 to vector<16x16xf32>
    %31 = arith.subf %30, %27 : vector<16x16xf32>
    %32 = arith.select %29, %27, %31 : vector<16x16xi1>, vector<16x16xf32>
    %c0_22 = arith.constant 0 : index
    %c0_23 = arith.constant 0 : index
    %33 = vector.load %arg8[%c0_22, %c0_23] : memref<16x16xf32, #tpu.memory_space<vmem>>, vector<16x16xf32>
    tpu.vector_store %arg8[%c0_22, %c0_23], %32 {strides = array<i32>} : memref<16x16xf32, #tpu.memory_space<vmem>>, vector<16x16xf32>,
    return
  }
  func.func @transform_0(%arg0: i32) -> (i32, i32) {
    %c0_i32 = arith.constant 0 : i32
    %c0_i32_0 = arith.constant 0 : i32
    return %arg0, %c0_i32 : i32, i32
  }
  func.func @transform_1(%arg0: i32) -> (i32, i32) {
    %c0_i32 = arith.constant 0 : i32
    %c0_i32_0 = arith.constant 0 : i32
    %c0_i32_1 = arith.constant 0 : i32
    return %c0_i32, %c0_i32_0 : i32, i32
  }
  func.func @transform_2(%arg0: i32) -> (i32, i32) {
    %c0_i32 = arith.constant 0 : i32
    %c0_i32_0 = arith.constant 0 : i32
    %c0_i32_1 = arith.constant 0 : i32
    return %c0_i32, %c0_i32_0 : i32, i32
  }
  func.func @transform_3(%arg0: i32) -> (i32, i32) {
    %c0_i32 = arith.constant 0 : i32
    %c0_i32_0 = arith.constant 0 : i32
    %c0_i32_1 = arith.constant 0 : i32
    return %c0_i32, %c0_i32_0 : i32, i32
  }
  func.func @transform_4(%arg0: i32) -> (i32, i32) {
    %c0_i32 = arith.constant 0 : i32
    %c0_i32_0 = arith.constant 0 : i32
    %c0_i32_1 = arith.constant 0 : i32
    return %c0_i32, %c0_i32_0 : i32, i32
  }
  func.func @transform_5(%arg0: i32) -> (i32, i32) {
    %c0_i32 = arith.constant 0 : i32
    %c0_i32_0 = arith.constant 0 : i32
    %c0_i32_1 = arith.constant 0 : i32
    return %c0_i32, %c0_i32_0 : i32, i32
  }
  func.func @transform_6(%arg0: i32) -> (i32, i32) {
    %c0_i32 = arith.constant 0 : i32
    %c0_i32_0 = arith.constant 0 : i32
    %c0_i32_1 = arith.constant 0 : i32
    return %c0_i32, %c0_i32_0 : i32, i32
  }
  func.func @transform_7(%arg0: i32) -> (i32, i32) {
    %c0_i32 = arith.constant 0 : i32
    %c0_i32_0 = arith.constant 0 : i32
    return %arg0, %c0_i32 : i32, i32
  }
}

</mosaic_0001>

<llo_original>
// kernel: tile.14
$region0: #{tile.14}
  #allocation0 [shape = 's32[1]{0}', space=sflag, size = 0x4, scoped, tag = 'scoped memory for tile.14']
  %s0 = inlined_call_operand.vmem [shape: f32[12], index: 0, kind: input, shape index: {}]
  %s1 = inlined_call_operand.vmem [shape: f32[16,12], index: 1, kind: output, shape index: {}]
  // Predicated region
  $region2: #{tile.14} parent=0 // pred_check
    _
  $region3: #{tile.14} parent=0 // pred_check_branch
    %3 = sbr.rel (0) target = $region5
  $region4: #{tile.14} parent=0 // pred_region
    _
  $region5: #{tile.14} parent=0 // pred_fallthru
    _
  %v4 = vld [vmem:[%s0] ss:$0 sm:$0xff]
  %5 = vst [vmem:[%s1] sm:$0xff] %v4
  %s6 = scalar_lea.vmem %s1, 8
  %7 = vst [vmem:[%s6] sm:$0xff] %v4

// kernel: tile.15
$region0: #{tile.15}
  %s0 = inlined_call_operand.vmem [shape: f32[16,12], index: 0, kind: input, shape index: {}]
  %s1 = inlined_call_operand.vmem [shape: f32[1,192], index: 1, kind: output, shape index: {}]
  $region1: #{tile.15} parent=0
    #allocation0 [shape = 'u8[8192]{0}', space=vmem, size = 0x2000, scoped, tag = 'scoped mem for output reshape']
    %v2 = vld [vmem:[%s0] sm:$0x1]
    %vm3 = vcmask 97280
    %4 = vst.msk [vmem:[#allocation0] sm:$0x1] %vm3, %v2
    %s5 = scalar_lea.vmem %s0, 10
    %v6 = vld [vmem:[%s5] sm:$0x1]
    %s7 = scalar_lea.vmem %s0, 10
    %v8 = vld [vmem:[%s7] sm:$0x1]
    %vm9 = vcmask 64512
    %v10 = vsel %vm9, %v8, %v6
    %11 = vrot.lane.b32.xlu0 %v10, 120
    %v12 = vpop.permute.xlu0 %11
    %vm13 = vcmask 31744
    %s14 = scalar_lea.vmem [#allocation0], 8
    %15 = vst.msk [vmem:[%s14] sm:$0x1] %vm13, %v12
    %vm16 = vcmask 1048512
    %17 = vst.msk [vmem:[#allocation0] sm:$0x1] %vm16, %v12
    %s18 = scalar_lea.vmem %s0, 9
    %v19 = vld [vmem:[%s18] sm:$0x1]
    %20 = vrot.lane.b32.xlu0 %v19, 108
    %v21 = vpop.permute.xlu0 %20
    %vm22 = vcmask 982880
    %23 = vst.msk [vmem:[#allocation0] sm:$0x1] %vm22, %v21
    %s24 = scalar_lea.vmem %s0, 8
    %v25 = vld [vmem:[%s24] sm:$0x1]
    %26 = vrot.lane.b32.xlu0 %v25, 96
    %v27 = vpop.permute.xlu0 %26
    %vm28 = vcmask 884480
    %29 = vst.msk [vmem:[#allocation0] sm:$0x1] %vm28, %v27
    %s30 = scalar_lea.vmem %s0, 7
    %v31 = vld [vmem:[%s30] sm:$0x1]
    %32 = vrot.lane.b32.xlu0 %v31, 84
    %v33 = vpop.permute.xlu0 %32
    %vm34 = vcmask 786080
    %35 = vst.msk [vmem:[#allocation0] sm:$0x1] %vm34, %v33
    %s36 = scalar_lea.vmem %s0, 6
    %v37 = vld [vmem:[%s36] sm:$0x1]
    %38 = vrot.lane.b32.xlu0 %v37, 72
    %v39 = vpop.permute.xlu0 %38
    %vm40 = vcmask 687680
    %41 = vst.msk [vmem:[#allocation0] sm:$0x1] %vm40, %v39
    %s42 = scalar_lea.vmem %s0, 5
    %v43 = vld [vmem:[%s42] sm:$0x1]
    %44 = vrot.lane.b32.xlu0 %v43, 60
    %v45 = vpop.permute.xlu0 %44
    %vm46 = vcmask 589280
    %47 = vst.msk [vmem:[#allocation0] sm:$0x1] %vm46, %v45
    %s48 = scalar_lea.vmem %s0, 15
    %v49 = vld [vmem:[%s48] sm:$0x1]
    %50 = vrot.lane.b32.xlu0 %v49, 52
    %v51 = vpop.permute.xlu0 %50
    %vm52 = vcmask 523680
    %s53 = scalar_lea.vmem [#allocation0], 8
    %54 = vst.msk [vmem:[%s53] sm:$0x1] %vm52, %v51
    %s55 = scalar_lea.vmem %s0, 4
    %v56 = vld [vmem:[%s55] sm:$0x1]
    %57 = vrot.lane.b32.xlu0 %v56, 48
    %v58 = vpop.permute.xlu0 %57
    %vm59 = vcmask 490880
    %60 = vst.msk [vmem:[#allocation0] sm:$0x1] %vm59, %v58
    %s61 = scalar_lea.vmem %s0, 14
    %v62 = vld [vmem:[%s61] sm:$0x1]
    %63 = vrot.lane.b32.xlu0 %v62, 40
    %v64 = vpop.permute.xlu0 %63
    %vm65 = vcmask 425280
    %s66 = scalar_lea.vmem [#allocation0], 8
    %67 = vst.msk [vmem:[%s66] sm:$0x1] %vm65, %v64
    %s68 = scalar_lea.vmem %s0, 3
    %v69 = vld [vmem:[%s68] sm:$0x1]
    %70 = vrot.lane.b32.xlu0 %v69, 36
    %v71 = vpop.permute.xlu0 %70
    %vm72 = vcmask 392480
    %73 = vst.msk [vmem:[#allocation0] sm:$0x1] %vm72, %v71
    %s74 = scalar_lea.vmem %s0, 13
    %v75 = vld [vmem:[%s74] sm:$0x1]
    %76 = vrot.lane.b32.xlu0 %v75, 28
    %v77 = vpop.permute.xlu0 %76
    %vm78 = vcmask 326880
    %s79 = scalar_lea.vmem [#allocation0], 8
    %80 = vst.msk [vmem:[%s79] sm:$0x1] %vm78, %v77
    %s81 = scalar_lea.vmem %s0, 2
    %v82 = vld [vmem:[%s81] sm:$0x1]
    %83 = vrot.lane.b32.xlu0 %v82, 24
    %v84 = vpop.permute.xlu0 %83
    %vm85 = vcmask 294080
    %86 = vst.msk [vmem:[#allocation0] sm:$0x1] %vm85, %v84
    %s87 = scalar_lea.vmem %s0, 12
    %v88 = vld [vmem:[%s87] sm:$0x1]
    %89 = vrot.lane.b32.xlu0 %v88, 16
    %v90 = vpop.permute.xlu0 %89
    %vm91 = vcmask 228480
    %s92 = scalar_lea.vmem [#allocation0], 8
    %93 = vst.msk [vmem:[%s92] sm:$0x1] %vm91, %v90
    %s94 = scalar_lea.vmem %s0, 1
    %v95 = vld [vmem:[%s94] sm:$0x1]
    %96 = vrot.lane.b32.xlu0 %v95, 12
    %v97 = vpop.permute.xlu0 %96
    %vm98 = vcmask 195680
    %99 = vst.msk [vmem:[#allocation0] sm:$0x1] %vm98, %v97
    %s100 = scalar_lea.vmem %s0, 11
    %v101 = vld [vmem:[%s100] sm:$0x1]
    %102 = vrot.lane.b32.xlu0 %v101, 4
    %v103 = vpop.permute.xlu0 %102
    %vm104 = vcmask 130080
    %s105 = scalar_lea.vmem [#allocation0], 8
    %106 = vst.msk [vmem:[%s105] sm:$0x1] %vm104, %v103
    %s108 = ssub.s32 2, 1
    %v109 = vld [vmem:[#allocation0] sm:%s108]
    %s111 = ssub.s32 2, 1
    %112 = vst [vmem:[%s1] sm:%s111] %v109
    %s113 = scalar_lea.vmem [#allocation0], 8
    %v114 = vld [vmem:[%s113] sm:%s108]
    %s116 = ssub.s32 2, 1
    %s117 = scalar_lea.vmem %s1, 1
    %118 = vst [vmem:[%s117] sm:%s116] %v114

// kernel: tile.18
$region0: #{tile.18}
  #allocation0 [shape = 's32[1]{0}', space=sflag, size = 0x4, scoped, tag = 'scoped memory for tile.18']
  %s0 = inlined_call_operand.vmem [shape: f32[8], index: 0, kind: input, shape index: {}]
  %s1 = inlined_call_operand.vmem [shape: f32[16,8], index: 1, kind: output, shape index: {}]
  // Predicated region
  $region2: #{tile.18} parent=0 // pred_check
    _
  $region3: #{tile.18} parent=0 // pred_check_branch
    %3 = sbr.rel (0) target = $region5
  $region4: #{tile.18} parent=0 // pred_region
    _
  $region5: #{tile.18} parent=0 // pred_fallthru
    _
  %v4 = vld [vmem:[%s0] ss:$0 sm:$0xff]
  %5 = vst [vmem:[%s1] sm:$0xff] %v4
  %s6 = scalar_lea.vmem %s1, 8
  %7 = vst [vmem:[%s6] sm:$0xff] %v4

// kernel: tile.19
$region0: #{tile.19}
  %s0 = inlined_call_operand.vmem [shape: f32[16,8], index: 0, kind: input, shape index: {}]
  %s1 = inlined_call_operand.vmem [shape: f32[1,128], index: 1, kind: output, shape index: {}]
  $region1: #{tile.19} parent=0
    #allocation0 [shape = 'u8[4096]{0}', space=vmem, size = 0x1000, scoped, tag = 'scoped mem for output reshape']
    %v2 = vld [vmem:[%s0] sm:$0x1]
    %vm3 = vcmask 64512
    %4 = vst.msk [vmem:[#allocation0] sm:$0x1] %vm3, %v2
    %s5 = scalar_lea.vmem %s0, 15
    %v6 = vld [vmem:[%s5] sm:$0x1]
    %7 = vrot.lane.b32.xlu0 %v6, 120
    %v8 = vpop.permute.xlu0 %7
    %vm9 = vcmask 1048512
    %10 = vst.msk [vmem:[#allocation0] sm:$0x1] %vm9, %v8
    %s11 = scalar_lea.vmem %s0, 14
    %v12 = vld [vmem:[%s11] sm:$0x1]
    %13 = vrot.lane.b32.xlu0 %v12, 112
    %v14 = vpop.permute.xlu0 %13
    %vm15 = vcmask 982912
    %16 = vst.msk [vmem:[#allocation0] sm:$0x1] %vm15, %v14
    %s17 = scalar_lea.vmem %s0, 13
    %v18 = vld [vmem:[%s17] sm:$0x1]
    %19 = vrot.lane.b32.xlu0 %v18, 104
    %v20 = vpop.permute.xlu0 %19
    %vm21 = vcmask 917312
    %22 = vst.msk [vmem:[#allocation0] sm:$0x1] %vm21, %v20
    %s23 = scalar_lea.vmem %s0, 12
    %v24 = vld [vmem:[%s23] sm:$0x1]
    %25 = vrot.lane.b32.xlu0 %v24, 96
    %v26 = vpop.permute.xlu0 %25
    %vm27 = vcmask 851712
    %28 = vst.msk [vmem:[#allocation0] sm:$0x1] %vm27, %v26
    %s29 = scalar_lea.vmem %s0, 11
    %v30 = vld [vmem:[%s29] sm:$0x1]
    %31 = vrot.lane.b32.xlu0 %v30, 88
    %v32 = vpop.permute.xlu0 %31
    %vm33 = vcmask 786112
    %34 = vst.msk [vmem:[#allocation0] sm:$0x1] %vm33, %v32
    %s35 = scalar_lea.vmem %s0, 10
    %v36 = vld [vmem:[%s35] sm:$0x1]
    %37 = vrot.lane.b32.xlu0 %v36, 80
    %v38 = vpop.permute.xlu0 %37
    %vm39 = vcmask 720512
    %40 = vst.msk [vmem:[#allocation0] sm:$0x1] %vm39, %v38
    %s41 = scalar_lea.vmem %s0, 9
    %v42 = vld [vmem:[%s41] sm:$0x1]
    %43 = vrot.lane.b32.xlu0 %v42, 72
    %v44 = vpop.permute.xlu0 %43
    %vm45 = vcmask 654912
    %46 = vst.msk [vmem:[#allocation0] sm:$0x1] %vm45, %v44
    %s47 = scalar_lea.vmem %s0, 8
    %v48 = vld [vmem:[%s47] sm:$0x1]
    %49 = vrot.lane.b32.xlu0 %v48, 64
    %v50 = vpop.permute.xlu0 %49
    %vm51 = vcmask 589312
    %52 = vst.msk [vmem:[#allocation0] sm:$0x1] %vm51, %v50
    %s53 = scalar_lea.vmem %s0, 7
    %v54 = vld [vmem:[%s53] sm:$0x1]
    %55 = vrot.lane.b32.xlu0 %v54, 56
    %v56 = vpop.permute.xlu0 %55
    %vm57 = vcmask 523712
    %58 = vst.msk [vmem:[#allocation0] sm:$0x1] %vm57, %v56
    %s59 = scalar_lea.vmem %s0, 6
    %v60 = vld [vmem:[%s59] sm:$0x1]
    %61 = vrot.lane.b32.xlu0 %v60, 48
    %v62 = vpop.permute.xlu0 %61
    %vm63 = vcmask 458112
    %64 = vst.msk [vmem:[#allocation0] sm:$0x1] %vm63, %v62
    %s65 = scalar_lea.vmem %s0, 5
    %v66 = vld [vmem:[%s65] sm:$0x1]
    %67 = vrot.lane.b32.xlu0 %v66, 40
    %v68 = vpop.permute.xlu0 %67
    %vm69 = vcmask 392512
    %70 = vst.msk [vmem:[#allocation0] sm:$0x1] %vm69, %v68
    %s71 = scalar_lea.vmem %s0, 4
    %v72 = vld [vmem:[%s71] sm:$0x1]
    %73 = vrot.lane.b32.xlu0 %v72, 32
    %v74 = vpop.permute.xlu0 %73
    %vm75 = vcmask 326912
    %76 = vst.msk [vmem:[#allocation0] sm:$0x1] %vm75, %v74
    %s77 = scalar_lea.vmem %s0, 3
    %v78 = vld [vmem:[%s77] sm:$0x1]
    %79 = vrot.lane.b32.xlu0 %v78, 24
    %v80 = vpop.permute.xlu0 %79
    %vm81 = vcmask 261312
    %82 = vst.msk [vmem:[#allocation0] sm:$0x1] %vm81, %v80
    %s83 = scalar_lea.vmem %s0, 2
    %v84 = vld [vmem:[%s83] sm:$0x1]
    %85 = vrot.lane.b32.xlu0 %v84, 16
    %v86 = vpop.permute.xlu0 %85
    %vm87 = vcmask 195712
    %88 = vst.msk [vmem:[#allocation0] sm:$0x1] %vm87, %v86
    %s89 = scalar_lea.vmem %s0, 1
    %v90 = vld [vmem:[%s89] sm:$0x1]
    %91 = vrot.lane.b32.xlu0 %v90, 8
    %v92 = vpop.permute.xlu0 %91
    %vm93 = vcmask 130112
    %94 = vst.msk [vmem:[#allocation0] sm:$0x1] %vm93, %v92
    %s96 = ssub.s32 2, 1
    %v97 = vld [vmem:[#allocation0] sm:%s96]
    %s99 = ssub.s32 2, 1
    %100 = vst [vmem:[%s1] sm:%s99] %v97

// kernel: pima_forward.1
$region0: #{pima_forward.1}
  #allocation0 [shape = 'u32[]', space=smem, size = 0x4, offset = 0x4, fixed_abs, tag = 'smem constant byte address 0x4 - core index']
  #allocation1 [shape = 'u32[72,128]{1,0:T(1,128)}', space=vmem, size = 0x9000, scoped, tag = 'internal scratch']
  %s0 = inlined_call_operand.vmem [shape: f32[48,128], index: 0, kind: input, shape index: {}]
  %s1 = inlined_call_operand.vmem [shape: f32[128,192], index: 1, kind: input, shape index: {}]
  %s2 = inlined_call_operand.vmem [shape: f32[1,192], index: 2, kind: input, shape index: {}]
  %s3 = inlined_call_operand.vmem [shape: f32[192,128], index: 3, kind: input, shape index: {}]
  %s4 = inlined_call_operand.vmem [shape: f32[1,128], index: 4, kind: input, shape index: {}]
  %s5 = inlined_call_operand.vmem [shape: f32[128,16], index: 5, kind: input, shape index: {}]
  %s6 = inlined_call_operand.vmem [shape: f32[1,16], index: 6, kind: input, shape index: {}]
  %s7 = inlined_call_operand.vmem [shape: f32[48,16], index: 7, kind: output, shape index: {}]
  %s8 = sld [smem:[#allocation0]]
  $region61: #{pima_forward.1} parent=0
    _
  %s10 = ssub.s32 1, %s8
  %s11 = scalar_select 0, %s10, %s8
  loop: start=0, step=1, limit=5
  $region2: #{pima_forward.1} parent=0 // loop_pre_header
    _
  $region3: #{pima_forward.1} parent=0 // loop_header
    %s13 = sphi 0, %s17
    %p14 = scmp.ge.s32.totalorder %s13, 5
    %s23 = sphi 0, %s25
    %s26 = sphi 0, %s23
    %s27 = sphi 0, %s26
    %s43 = sphi 0, %s27
    %s47 = sphi 0, %s47
    %s49 = sphi 0, %s47
    %s50 = sphi 0, %s49
    %s64 = sphi 0, %s50
    %s68 = sphi 0, %s68
    %s70 = sphi 0, %s68
    %s71 = sphi 0, %s70
    %s85 = sphi 0, %s71
    %s89 = sphi 0, %s89
    %s91 = sphi 0, %s89
    %s92 = sphi 0, %s91
    %s106 = sphi 0, %s92
    %s110 = sphi 0, %s110
    %s112 = sphi 0, %s110
    %s113 = sphi 0, %s112
    %s127 = sphi 0, %s113
    %s131 = sphi 0, %s131
    %s133 = sphi 0, %s131
    %s134 = sphi 0, %s133
    %s148 = sphi 0, %s134
    %s152 = sphi 0, %s152
    %s154 = sphi 0, %s152
    %s155 = sphi 0, %s154
    %s169 = sphi 0, %s155
    %s175 = sphi 0, %s177
    %s178 = sphi 0, %s175
    %s179 = sphi 0, %s178
    %s195 = sphi 0, %s179
  $region4: #{pima_forward.1} parent=0 // loop_header_branch
    %16 = sbr.rel (%p14) target = $region8
  $region5: #{pima_forward.1} parent=0 // loop_body
    %s18 = ssub.s32 %s13, 1
    %s19 = ssub.s32 %s13, 2
    %s20 = sadd.s32 %s13, 1
    %s21 = ssub.s32 %s13, %s20
    %p22 = scmp.eq.s32.totalorder %s21, 0
    %s24 = sadd.s32 %s23, 1
    %s25 = scalar_select %p22, %s23, %s24
    %p28 = pneg %p22
    %p29 = scmp.eq.s32.totalorder %s13, 2
    %p30 = por %p28, %p29
    %p31 = scmp.ne.s32.totalorder %s23, %s26
    %p32 = scmp.eq.s32.totalorder %s13, 0
    %p33 = por %p31, %p32
    %p34 = scmp.ne.s32.totalorder %s23, %s26
    %p35 = scmp.eq.s32.totalorder %s18, 2
    %p36 = por %p34, %p35
    %p37 = scmp.ne.s32.totalorder %s26, %s27
    %p38 = scmp.eq.s32.totalorder %s18, 0
    %p39 = por %p37, %p38
    %p40 = scmp.ne.s32.totalorder %s26, %s27
    %p41 = scmp.eq.s32.totalorder %s19, 2
    %p42 = por %p40, %p41
    %p44 = scmp.ne.s32.totalorder %s27, %s43
    %p45 = scmp.eq.s32.totalorder %s19, 0
    %p46 = por %p44, %p45
    %s48 = sadd.s32 %s47, 1
    %p51 = scmp.eq.s32.totalorder %s13, 2
    %p52 = scmp.ne.s32.totalorder %s47, %s49
    %p53 = scmp.eq.s32.totalorder %s13, 0
    %p54 = por %p52, %p53
    %p55 = scmp.ne.s32.totalorder %s47, %s49
    %p56 = scmp.eq.s32.totalorder %s18, 2
    %p57 = por %p55, %p56
    %p58 = scmp.ne.s32.totalorder %s49, %s50
    %p59 = scmp.eq.s32.totalorder %s18, 0
    %p60 = por %p58, %p59
    %p61 = scmp.ne.s32.totalorder %s49, %s50
    %p62 = scmp.eq.s32.totalorder %s19, 2
    %p63 = por %p61, %p62
    %p65 = scmp.ne.s32.totalorder %s50, %s64
    %p66 = scmp.eq.s32.totalorder %s19, 0
    %p67 = por %p65, %p66
    %s69 = sadd.s32 %s68, 1
    %p72 = scmp.eq.s32.totalorder %s13, 2
    %p73 = scmp.ne.s32.totalorder %s68, %s70
    %p74 = scmp.eq.s32.totalorder %s13, 0
    %p75 = por %p73, %p74
    %p76 = scmp.ne.s32.totalorder %s68, %s70
    %p77 = scmp.eq.s32.totalorder %s18, 2
    %p78 = por %p76, %p77
    %p79 = scmp.ne.s32.totalorder %s70, %s71
    %p80 = scmp.eq.s32.totalorder %s18, 0
    %p81 = por %p79, %p80
    %p82 = scmp.ne.s32.totalorder %s70, %s71
    %p83 = scmp.eq.s32.totalorder %s19, 2
    %p84 = por %p82, %p83
    %p86 = scmp.ne.s32.totalorder %s71, %s85
    %p87 = scmp.eq.s32.totalorder %s19, 0
    %p88 = por %p86, %p87
    %s90 = sadd.s32 %s89, 1
    %p93 = scmp.eq.s32.totalorder %s13, 2
    %p94 = scmp.ne.s32.totalorder %s89, %s91
    %p95 = scmp.eq.s32.totalorder %s13, 0
    %p96 = por %p94, %p95
    %p97 = scmp.ne.s32.totalorder %s89, %s91
    %p98 = scmp.eq.s32.totalorder %s18, 2
    %p99 = por %p97, %p98
    %p100 = scmp.ne.s32.totalorder %s91, %s92
    %p101 = scmp.eq.s32.totalorder %s18, 0
    %p102 = por %p100, %p101
    %p103 = scmp.ne.s32.totalorder %s91, %s92
    %p104 = scmp.eq.s32.totalorder %s19, 2
    %p105 = por %p103, %p104
    %p107 = scmp.ne.s32.totalorder %s92, %s106
    %p108 = scmp.eq.s32.totalorder %s19, 0
    %p109 = por %p107, %p108
    %s111 = sadd.s32 %s110, 1
    %p114 = scmp.eq.s32.totalorder %s13, 2
    %p115 = scmp.ne.s32.totalorder %s110, %s112
    %p116 = scmp.eq.s32.totalorder %s13, 0
    %p117 = por %p115, %p116
    %p118 = scmp.ne.s32.totalorder %s110, %s112
    %p119 = scmp.eq.s32.totalorder %s18, 2
    %p120 = por %p118, %p119
    %p121 = scmp.ne.s32.totalorder %s112, %s113
    %p122 = scmp.eq.s32.totalorder %s18, 0
    %p123 = por %p121, %p122
    %p124 = scmp.ne.s32.totalorder %s112, %s113
    %p125 = scmp.eq.s32.totalorder %s19, 2
    %p126 = por %p124, %p125
    %p128 = scmp.ne.s32.totalorder %s113, %s127
    %p129 = scmp.eq.s32.totalorder %s19, 0
    %p130 = por %p128, %p129
    %s132 = sadd.s32 %s131, 1
    %p135 = scmp.eq.s32.totalorder %s13, 2
    %p136 = scmp.ne.s32.totalorder %s131, %s133
    %p137 = scmp.eq.s32.totalorder %s13, 0
    %p138 = por %p136, %p137
    %p139 = scmp.ne.s32.totalorder %s131, %s133
    %p140 = scmp.eq.s32.totalorder %s18, 2
    %p141 = por %p139, %p140
    %p142 = scmp.ne.s32.totalorder %s133, %s134
    %p143 = scmp.eq.s32.totalorder %s18, 0
    %p144 = por %p142, %p143
    %p145 = scmp.ne.s32.totalorder %s133, %s134
    %p146 = scmp.eq.s32.totalorder %s19, 2
    %p147 = por %p145, %p146
    %p149 = scmp.ne.s32.totalorder %s134, %s148
    %p150 = scmp.eq.s32.totalorder %s19, 0
    %p151 = por %p149, %p150
    %s153 = sadd.s32 %s152, 1
    %p156 = scmp.eq.s32.totalorder %s13, 2
    %p157 = scmp.ne.s32.totalorder %s152, %s154
    %p158 = scmp.eq.s32.totalorder %s13, 0
    %p159 = por %p157, %p158
    %p160 = scmp.ne.s32.totalorder %s152, %s154
    %p161 = scmp.eq.s32.totalorder %s18, 2
    %p162 = por %p160, %p161
    %p163 = scmp.ne.s32.totalorder %s154, %s155
    %p164 = scmp.eq.s32.totalorder %s18, 0
    %p165 = por %p163, %p164
    %p166 = scmp.ne.s32.totalorder %s154, %s155
    %p167 = scmp.eq.s32.totalorder %s19, 2
    %p168 = por %p166, %p167
    %p170 = scmp.ne.s32.totalorder %s155, %s169
    %p171 = scmp.eq.s32.totalorder %s19, 0
    %p172 = por %p170, %p171
    %s173 = ssub.s32 %s13, %s20
    %p174 = scmp.eq.s32.totalorder %s173, 0
    %s176 = sadd.s32 %s175, 1
    %s177 = scalar_select %p174, %s175, %s176
    %p180 = pneg %p174
    %p181 = scmp.eq.s32.totalorder %s13, 2
    %p182 = por %p180, %p181
    %p183 = scmp.ne.s32.totalorder %s175, %s178
    %p184 = scmp.eq.s32.totalorder %s13, 0
    %p185 = por %p183, %p184
    %p186 = scmp.ne.s32.totalorder %s175, %s178
    %p187 = scmp.eq.s32.totalorder %s18, 2
    %p188 = por %p186, %p187
    %p189 = scmp.ne.s32.totalorder %s178, %s179
    %p190 = scmp.eq.s32.totalorder %s18, 0
    %p191 = por %p189, %p190
    %p192 = scmp.ne.s32.totalorder %s178, %s179
    %p193 = scmp.eq.s32.totalorder %s19, 2
    %p194 = por %p192, %p193
    %p196 = scmp.ne.s32.totalorder %s179, %s195
    %p197 = scmp.eq.s32.totalorder %s19, 0
    %p198 = por %p196, %p197
    %p199 = scmp.le.s32.totalorder 1, %s13
    %p200 = scmp.lt.s32.totalorder %s13, 4
    %p201 = pnand %p199, %p200
    %p202 = pneg %p201
    // Predicated region
    $region9: #{pima_forward.1} parent=5 // pred_check
      _
    $region10: #{pima_forward.1} parent=5 // pred_check_branch
      %204 = sbr.rel (%p201) target = $region12
    $region11: #{pima_forward.1} parent=5 // pred_region
      %s205 = ssub.s32 %s13, 1
      // Predicated region
      $region13: #{pima_forward.1} parent=11 // pred_check
        %p206 = pneg %p60
      $region14: #{pima_forward.1} parent=11 // pred_check_branch
        %208 = sbr.rel (%p206) target = $region16
      $region15: #{pima_forward.1} parent=11 // pred_region
        _
      $region16: #{pima_forward.1} parent=11 // pred_fallthru
        _
      // Predicated region
      $region17: #{pima_forward.1} parent=11 // pred_check
        %p209 = pneg %p81
      $region18: #{pima_forward.1} parent=11 // pred_check_branch
        %211 = sbr.rel (%p209) target = $region20
      $region19: #{pima_forward.1} parent=11 // pred_region
        _
      $region20: #{pima_forward.1} parent=11 // pred_fallthru
        _
      // Predicated region
      $region21: #{pima_forward.1} parent=11 // pred_check
        %p212 = pneg %p102
      $region22: #{pima_forward.1} parent=11 // pred_check_branch
        %214 = sbr.rel (%p212) target = $region24
      $region23: #{pima_forward.1} parent=11 // pred_region
        _
      $region24: #{pima_forward.1} parent=11 // pred_fallthru
        _
      // Predicated region
      $region25: #{pima_forward.1} parent=11 // pred_check
        %p215 = pneg %p123
      $region26: #{pima_forward.1} parent=11 // pred_check_branch
        %217 = sbr.rel (%p215) target = $region28
      $region27: #{pima_forward.1} parent=11 // pred_region
        _
      $region28: #{pima_forward.1} parent=11 // pred_fallthru
        _
      // Predicated region
      $region29: #{pima_forward.1} parent=11 // pred_check
        %p218 = pneg %p144
      $region30: #{pima_forward.1} parent=11 // pred_check_branch
        %220 = sbr.rel (%p218) target = $region32
      $region31: #{pima_forward.1} parent=11 // pred_region
        _
      $region32: #{pima_forward.1} parent=11 // pred_fallthru
        _
      // Predicated region
      $region33: #{pima_forward.1} parent=11 // pred_check
        %p221 = pneg %p165
      $region34: #{pima_forward.1} parent=11 // pred_check_branch
        %223 = sbr.rel (%p221) target = $region36
      $region35: #{pima_forward.1} parent=11 // pred_region
        _
      $region36: #{pima_forward.1} parent=11 // pred_fallthru
        _
    $region12: #{pima_forward.1} parent=5 // pred_fallthru
      _
    %p224 = scmp.lt.s32.totalorder %s13, 3
    // Predicated region
    $region37: #{pima_forward.1} parent=5 // pred_check
      %p225 = pneg %p224
    $region38: #{pima_forward.1} parent=5 // pred_check_branch
      %227 = sbr.rel (%p225) target = $region40
    $region39: #{pima_forward.1} parent=5 // pred_region
      // Predicated region
      $region41: #{pima_forward.1} parent=39 // pred_check
        %p228 = pneg %p33
      $region42: #{pima_forward.1} parent=39 // pred_check_branch
        %230 = sbr.rel (%p228) target = $region44
      $region43: #{pima_forward.1} parent=39 // pred_region
        %s231 = smul.u32 2, %s13
        %p232 = scmp.lt.s32.totalorder %s231, 5
        %s233 = scalar_select %p232, %s231, 5
        %s234 = smul.addr %s233, 8
        %s235 = scalar_lea.vmem %s0, %s234
        %s236 = smul.u32 2, %s13
      $region44: #{pima_forward.1} parent=39 // pred_fallthru
        _
    $region40: #{pima_forward.1} parent=5 // pred_fallthru
      _
    %p237 = scmp.le.s32.totalorder 1, %s13
    %p238 = scmp.lt.s32.totalorder %s13, 4
    %p239 = pnand %p237, %p238
    %p240 = pneg %p239
    // Predicated region
    $region45: #{pima_forward.1} parent=5 // pred_check
      _
    $region46: #{pima_forward.1} parent=5 // pred_check_branch
      %242 = sbr.rel (%p239) target = $region48
    $region47: #{pima_forward.1} parent=5 // pred_region
      %s243 = ssub.s32 %s13, 1
      %s244 = smul.u32 2, %s18
      %p245 = scmp.lt.s32.totalorder %s244, 5
      %s246 = scalar_select %p245, %s244, 5
      %s247 = smul.addr %s246, 8
      %s248 = scalar_lea.vmem %s0, %s247
      %p249 = pneg %p39
      %p250 = pneg %p36
      %p251 = pneg %p60
      %p252 = pneg %p57
      %p253 = pneg %p81
      %p254 = pneg %p78
      %p255 = pneg %p102
      %p256 = pneg %p99
      %p257 = pneg %p123
      %p258 = pneg %p120
      %p259 = pneg %p144
      %p260 = pneg %p141
      %p261 = pneg %p165
      %p262 = pneg %p162
      %p263 = pneg %p191
      %p264 = pneg %p188
      %s265 = smul.u32 2, %s18
      %p266 = scmp.lt.s32.totalorder %s265, 5
      %s267 = scalar_select %p266, %s265, 5
      %s268 = smul.addr %s267, 8
      %s269 = scalar_lea.vmem %s7, %s268
      %s270 = smul.u32 2, %s18
      %p271 = scmp.lt.s32.totalorder %s270, 5
      %s272 = scalar_select %p271, %s270, 5
      %s273 = smul.addr %s272, 8
      %s274 = scalar_lea.vmem %s0, %s273
      %s275 = smul.u32 2, %s18
      %s276 = smul.u32 2, %s18
      %p277 = scmp.lt.s32.totalorder %s276, 5
      %s278 = scalar_select %p277, %s276, 5
      %s279 = smul.addr %s278, 8
      %s280 = scalar_lea.vmem %s7, %s279
      %s281 = smul.u32 2, %s18
      %v282 = vld [vmem:[%s274] sm:$0xff]
      %v283 = vld [vmem:[%s274 + $0x8] sm:$0xff]
      %v284 = vld [vmem:[%s1] sm:$0xff]
      %v285 = vld [vmem:[%s1 + $0x8] sm:$0xff]
      %v286 = vld [vmem:[%s1 + $0x10] sm:$0xff]
      %v287 = vld [vmem:[%s1 + $0x18] sm:$0xff]
      %v288 = vld [vmem:[%s1 + $0x20] sm:$0xff]
      %v289 = vld [vmem:[%s1 + $0x28] sm:$0xff]
      %v290 = vld [vmem:[%s1 + $0x30] sm:$0xff]
      %v291 = vld [vmem:[%s1 + $0x38] sm:$0xff]
      %v292 = vld [vmem:[%s1 + $0x40] sm:$0xff]
      %v293 = vld [vmem:[%s1 + $0x48] sm:$0xff]
      %v294 = vld [vmem:[%s1 + $0x50] sm:$0xff]
      %v295 = vld [vmem:[%s1 + $0x58] sm:$0xff]
      %v296 = vld [vmem:[%s1 + $0x60] sm:$0xff]
      %v297 = vld [vmem:[%s1 + $0x68] sm:$0xff]
      %v298 = vld [vmem:[%s1 + $0x70] sm:$0xff]
      %v299 = vld [vmem:[%s1 + $0x78] sm:$0xff]
      %v300 = vld [vmem:[%s1 + $0x80] sm:$0xff]
      %v301 = vld [vmem:[%s1 + $0x88] sm:$0xff]
      %v302 = vld [vmem:[%s1 + $0x90] sm:$0xff]
      %v303 = vld [vmem:[%s1 + $0x98] sm:$0xff]
      %v304 = vld [vmem:[%s1 + $0xa0] sm:$0xff]
      %v305 = vld [vmem:[%s1 + $0xa8] sm:$0xff]
      %v306 = vld [vmem:[%s1 + $0xb0] sm:$0xff]
      %v307 = vld [vmem:[%s1 + $0xb8] sm:$0xff]
      %v308 = vld [vmem:[%s1 + $0xc0] sm:$0xff]
      %v309 = vld [vmem:[%s1 + $0xc8] sm:$0xff]
      %v310 = vld [vmem:[%s1 + $0xd0] sm:$0xff]
      %v311 = vld [vmem:[%s1 + $0xd8] sm:$0xff]
      %v312 = vld [vmem:[%s1 + $0xe0] sm:$0xff]
      %v313 = vld [vmem:[%s1 + $0xe8] sm:$0xff]
      %v314 = vld [vmem:[%s1 + $0xf0] sm:$0xff]
      %v315 = vld [vmem:[%s1 + $0xf8] sm:$0xff]
      %v316 = vld [vmem:[%s2] sm:$0x3]
      %v318 = vperm.slane %v316, 0
      %v319 = vperm.slane %v316, 1
      %322 = vmatpush.msra.mxu0 %v314
      %323 = vmatpush.msra.mxu0 %v312
      %324 = vmatpush.msra.mxu0 %v310
      %325 = vmatpush.msra.mxu0 %v308
      %326 = vmatpush.msra.mxu0 %v306
      %327 = vmatpush.msra.mxu0 %v304
      %328 = vmatpush.msra.mxu0 %v302
      %329 = vmatpush.msra.mxu0 %v300
      %330 = vmatpush.msra.mxu0 %v298
      %331 = vmatpush.msra.mxu0 %v296
      %332 = vmatpush.msra.mxu0 %v294
      %333 = vmatpush.msra.mxu0 %v292
      %334 = vmatpush.msra.mxu0 %v290
      %335 = vmatpush.msra.mxu0 %v288
      %336 = vmatpush.msra.mxu0 %v286
      %337 = vmatpush.msra.mxu0 %v284
      %338 = vmatmul.f32.gmra.mxu0 %v282
      %v339 = vpop.f32.mrf.mxu0
      %v340 = vadd.f32 %v318, %v339
      %341 = vmatmul.f32.gmra.mxu0 %v283
      %v342 = vpop.f32.mrf.mxu0
      %v343 = vadd.f32 %v318, %v342
      %344 = vdwg.mxu0
      %345 = vmatpush.msra.mxu0 %v315
      %346 = vmatpush.msra.mxu0 %v313
      %347 = vmatpush.msra.mxu0 %v311
      %348 = vmatpush.msra.mxu0 %v309
      %349 = vmatpush.msra.mxu0 %v307
      %350 = vmatpush.msra.mxu0 %v305
      %351 = vmatpush.msra.mxu0 %v303
      %352 = vmatpush.msra.mxu0 %v301
      %353 = vmatpush.msra.mxu0 %v299
      %354 = vmatpush.msra.mxu0 %v297
      %355 = vmatpush.msra.mxu0 %v295
      %356 = vmatpush.msra.mxu0 %v293
      %357 = vmatpush.msra.mxu0 %v291
      %358 = vmatpush.msra.mxu0 %v289
      %359 = vmatpush.msra.mxu0 %v287
      %360 = vmatpush.msra.mxu0 %v285
      %361 = vmatmul.f32.gmra.mxu0 %v282
      %v362 = vpop.f32.mrf.mxu0
      %v363 = vadd.f32 %v319, %v362
      %364 = vmatmul.f32.gmra.mxu0 %v283
      %v365 = vpop.f32.mrf.mxu0
      %v366 = vadd.f32 %v319, %v365
      %367 = vdwg.mxu0
      %v368 = vmax.f32 %v340, 0.0
      %v369 = vmax.f32 %v363, 0.0
      %v370 = vmax.f32 %v343, 0.0
      %v371 = vmax.f32 %v366, 0.0
      %v372 = vld [vmem:[%s3] sm:$0xff]
      %v373 = vld [vmem:[%s3 + $0x8] sm:$0xff]
      %v374 = vld [vmem:[%s3 + $0x10] sm:$0xff]
      %v375 = vld [vmem:[%s3 + $0x18] sm:$0xff]
      %v376 = vld [vmem:[%s3 + $0x20] sm:$0xff]
      %v377 = vld [vmem:[%s3 + $0x28] sm:$0xff]
      %v378 = vld [vmem:[%s3 + $0x30] sm:$0xff]
      %v379 = vld [vmem:[%s3 + $0x38] sm:$0xff]
      %v380 = vld [vmem:[%s3 + $0x40] sm:$0xff]
      %v381 = vld [vmem:[%s3 + $0x48] sm:$0xff]
      %v382 = vld [vmem:[%s3 + $0x50] sm:$0xff]
      %v383 = vld [vmem:[%s3 + $0x58] sm:$0xff]
      %v384 = vld [vmem:[%s3 + $0x60] sm:$0xff]
      %v385 = vld [vmem:[%s3 + $0x68] sm:$0xff]
      %v386 = vld [vmem:[%s3 + $0x70] sm:$0xff]
      %v387 = vld [vmem:[%s3 + $0x78] sm:$0xff]
      %v388 = vld [vmem:[%s3 + $0x80] sm:$0xff]
      %v389 = vld [vmem:[%s3 + $0x88] sm:$0xff]
      %v390 = vld [vmem:[%s3 + $0x90] sm:$0xff]
      %v391 = vld [vmem:[%s3 + $0x98] sm:$0xff]
      %v392 = vld [vmem:[%s3 + $0xa0] sm:$0xff]
      %v393 = vld [vmem:[%s3 + $0xa8] sm:$0xff]
      %v394 = vld [vmem:[%s3 + $0xb0] sm:$0xff]
      %v395 = vld [vmem:[%s3 + $0xb8] sm:$0xff]
      %v396 = vld [vmem:[%s4] sm:$0x1]
      %v398 = vperm.slane %v396, 0
      %vm400 = vcmask 523264
      %v402 = vsel %vm400, %v369, 0
      %v405 = vsel %vm400, %v371, 0
      %407 = vmatpush.msra.mxu0 %v387
      %408 = vmatpush.msra.mxu0 %v386
      %409 = vmatpush.msra.mxu0 %v385
      %410 = vmatpush.msra.mxu0 %v384
      %411 = vmatpush.msra.mxu0 %v383
      %412 = vmatpush.msra.mxu0 %v382
      %413 = vmatpush.msra.mxu0 %v381
      %414 = vmatpush.msra.mxu0 %v380
      %415 = vmatpush.msra.mxu0 %v379
      %416 = vmatpush.msra.mxu0 %v378
      %417 = vmatpush.msra.mxu0 %v377
      %418 = vmatpush.msra.mxu0 %v376
      %419 = vmatpush.msra.mxu0 %v375
      %420 = vmatpush.msra.mxu0 %v374
      %421 = vmatpush.msra.mxu0 %v373
      %422 = vmatpush.msra.mxu0 %v372
      %423 = vmatmul.f32.gmra.mxu0 %v368
      %v424 = vpop.f32.mrf.mxu0
      %v425 = vadd.f32 %v398, %v424
      %426 = vmatmul.f32.gmra.mxu0 %v370
      %v427 = vpop.f32.mrf.mxu0
      %v428 = vadd.f32 %v398, %v427
      %429 = vdwg.mxu0
      %430 = vmatpush.msra.mxu0 0.0
      %431 = vmatpush.msra.mxu0 0.0
      %432 = vmatpush.msra.mxu0 0.0
      %433 = vmatpush.msra.mxu0 0.0
      %434 = vmatpush.msra.mxu0 0.0
      %435 = vmatpush.msra.mxu0 0.0
      %436 = vmatpush.msra.mxu0 0.0
      %437 = vmatpush.msra.mxu0 0.0
      %438 = vmatpush.msra.mxu0 %v395
      %439 = vmatpush.msra.mxu0 %v394
      %440 = vmatpush.msra.mxu0 %v393
      %441 = vmatpush.msra.mxu0 %v392
      %442 = vmatpush.msra.mxu0 %v391
      %443 = vmatpush.msra.mxu0 %v390
      %444 = vmatpush.msra.mxu0 %v389
      %445 = vmatpush.msra.mxu0 %v388
      %446 = vmatmul.f32.gmra.mxu0 %v402
      %v447 = vpop.f32.mrf.mxu0
      %v448 = vadd.f32 %v425, %v447
      %449 = vmatmul.f32.gmra.mxu0 %v405
      %v450 = vpop.f32.mrf.mxu0
      %v451 = vadd.f32 %v428, %v450
      %452 = vdwg.mxu0
      %v453 = vmax.f32 %v448, 0.0
      %v454 = vmax.f32 %v451, 0.0
      %v455 = vld [vmem:[%s5] sm:$0xff]
      %v456 = vld [vmem:[%s5 + $0x8] sm:$0xff]
      %v457 = vld [vmem:[%s5 + $0x10] sm:$0xff]
      %v458 = vld [vmem:[%s5 + $0x18] sm:$0xff]
      %v459 = vld [vmem:[%s5 + $0x20] sm:$0xff]
      %v460 = vld [vmem:[%s5 + $0x28] sm:$0xff]
      %v461 = vld [vmem:[%s5 + $0x30] sm:$0xff]
      %v462 = vld [vmem:[%s5 + $0x38] sm:$0xff]
      %v463 = vld [vmem:[%s5 + $0x40] sm:$0xff]
      %v464 = vld [vmem:[%s5 + $0x48] sm:$0xff]
      %v465 = vld [vmem:[%s5 + $0x50] sm:$0xff]
      %v466 = vld [vmem:[%s5 + $0x58] sm:$0xff]
      %v467 = vld [vmem:[%s5 + $0x60] sm:$0xff]
      %v468 = vld [vmem:[%s5 + $0x68] sm:$0xff]
      %v469 = vld [vmem:[%s5 + $0x70] sm:$0xff]
      %v470 = vld [vmem:[%s5 + $0x78] sm:$0xff]
      %v471 = vld [vmem:[%s6] sm:$0x1]
      %v473 = vperm.slane %v471, 0
      %475 = vmatpush.msra.mxu0 %v470
      %476 = vmatpush.msra.mxu0 %v469
      %477 = vmatpush.msra.mxu0 %v468
      %478 = vmatpush.msra.mxu0 %v467
      %479 = vmatpush.msra.mxu0 %v466
      %480 = vmatpush.msra.mxu0 %v465
      %481 = vmatpush.msra.mxu0 %v464
      %482 = vmatpush.msra.mxu0 %v463
      %483 = vmatpush.msra.mxu0 %v462
      %484 = vmatpush.msra.mxu0 %v461
      %485 = vmatpush.msra.mxu0 %v460
      %486 = vmatpush.msra.mxu0 %v459
      %487 = vmatpush.msra.mxu0 %v458
      %488 = vmatpush.msra.mxu0 %v457
      %489 = vmatpush.msra.mxu0 %v456
      %490 = vmatpush.msra.mxu0 %v455
      %491 = vmatmul.f32.gmra.mxu0 %v453
      %v492 = vpop.f32.mrf.mxu0
      %v493 = vadd.f32 %v473, %v492
      %494 = vmatmul.f32.gmra.mxu0 %v454
      %v495 = vpop.f32.mrf.mxu0
      %v496 = vadd.f32 %v473, %v495
      %497 = vdwg.mxu0
      %v498 = vand.u32 2147483647, %v493
      %v499 = vand.u32 2147483647, %v496
      %v500 = vsub.f32 0.0, %v498
      %v501 = vsub.f32 0.0, %v499
      %v502 = vmul.f32 %v500, 1.442695
      %v503 = vpow.pop %v502
      %v504 = vmul.f32 %v501, 1.442695
      %v505 = vpow.pop %v504
      %v506 = vadd.f32 %v503, 1.0
      %v507 = vadd.f32 %v505, 1.0
      %v508 = vrcp.pop %v506
      %v509 = vmul.f32 %v506, %v508
      %v510 = vsub.f32 1.0, %v509
      %v511 = vmul.f32 %v508, %v510
      %v512 = vadd.f32 %v508, %v511
      %vm513 = vweird.f32 %v506
      %vm514 = vweird.f32 %v508
      %vm515 = vmor %vm513, %vm514
      %v516 = vsel %vm515, %v508, %v512
      %v517 = vand.u32 2147483647, %v506
      %vm518 = vcmp.eq.f32.partialorder %v517, 8.507059e+37
      %v519 = vand.u32 %v506, 2147483648
      %v520 = vor.u32 1.1754944e-38, %v519
      %v521 = vsel %vm518, %v520, %v516
      %v522 = vmul.f32 1.0, %v521
      %v523 = vrcp.pop %v507
      %v524 = vmul.f32 %v507, %v523
      %v525 = vsub.f32 1.0, %v524
      %v526 = vmul.f32 %v523, %v525
      %v527 = vadd.f32 %v523, %v526
      %vm528 = vweird.f32 %v507
      %vm529 = vweird.f32 %v523
      %vm530 = vmor %vm528, %vm529
      %v531 = vsel %vm530, %v523, %v527
      %v532 = vand.u32 2147483647, %v507
      %vm533 = vcmp.eq.f32.partialorder %v532, 8.507059e+37
      %v534 = vand.u32 %v507, 2147483648
      %v535 = vor.u32 1.1754944e-38, %v534
      %v536 = vsel %vm533, %v535, %v531
      %v537 = vmul.f32 1.0, %v536
      %vm538 = vcmp.ge.f32.partialorder %v493, 0.0
      %vm539 = vcmp.ge.f32.partialorder %v496, 0.0
      %v540 = vsub.f32 1.0, %v522
      %v541 = vsub.f32 1.0, %v537
      %v542 = vsel %vm538, %v522, %v540
      %v543 = vsel %vm539, %v537, %v541
      %vm544 = vcmask 130048
      %545 = vst.msk [vmem:[%s280] sm:$0xff] %vm544, %v542
      %546 = vst.msk [vmem:[%s280 + $0x8] sm:$0xff] %vm544, %v543
      %s547 = smul.u32 2, %s18
      %p548 = scmp.lt.s32.totalorder %s547, 5
      %s549 = scalar_select %p548, %s547, 5
      %s550 = smul.addr %s549, 8
      %s551 = scalar_lea.vmem %s7, %s550
      // Predicated region
      $region49: #{pima_forward.1} parent=47 // pred_check
        %p552 = pneg %p188
      $region50: #{pima_forward.1} parent=47 // pred_check_branch
        %554 = sbr.rel (%p552) target = $region52
      $region51: #{pima_forward.1} parent=47 // pred_region
        %s555 = smul.u32 2, %s18
      $region52: #{pima_forward.1} parent=47 // pred_fallthru
        _
    $region48: #{pima_forward.1} parent=5 // pred_fallthru
      _
    %p556 = scmp.le.s32.totalorder 2, %s13
    // Predicated region
    $region53: #{pima_forward.1} parent=5 // pred_check
      %p557 = pneg %p556
    $region54: #{pima_forward.1} parent=5 // pred_check_branch
      %559 = sbr.rel (%p557) target = $region56
    $region55: #{pima_forward.1} parent=5 // pred_region
      %s560 = ssub.s32 %s13, 2
      // Predicated region
      $region57: #{pima_forward.1} parent=55 // pred_check
        %p561 = pneg %p194
      $region58: #{pima_forward.1} parent=55 // pred_check_branch
        %563 = sbr.rel (%p561) target = $region60
      $region59: #{pima_forward.1} parent=55 // pred_region
        %s564 = smul.u32 2, %s19
        %p565 = scmp.lt.s32.totalorder %s564, 5
        %s566 = scalar_select %p565, %s564, 5
        %s567 = smul.addr %s566, 8
        %s568 = scalar_lea.vmem %s7, %s567
      $region60: #{pima_forward.1} parent=55 // pred_fallthru
        _
    $region56: #{pima_forward.1} parent=5 // pred_fallthru
      _
  $region6: #{pima_forward.1} parent=0 // loop_footer
    %s17 = sadd.s32 1, %s13
  $region7: #{pima_forward.1} parent=0 // loop_footer_branch
    %12 = sbr.rel target = $region3
  $region8: #{pima_forward.1} parent=0 // loop_exit
    _

</llo_original>
